<compile_context>
chip_gen: v6e
topology: v6e:2x2x1
jax: 0.10.0
libtpu: 0.0.40
codegen_flags: <defaults>
</compile_context>

<pallas_src>
import jax
import jax.numpy as jnp
from jax.experimental import pallas as pl
from jax.experimental.pallas import tpu as pltpu


def _round_up(x, m):
    return ((x + m - 1) // m) * m


def _vmem_limit_bytes():
    """Per-generation scoped-VMEM limit: ~0.75x physical, capped at 96 MiB."""
    cap = 64 * 1024 * 1024  # conservative fallback (v7x per-TensorCore VMEM)
    try:
        info = pltpu.get_tpu_info()
        cap = int(getattr(info, "vmem_capacity_bytes", cap) or cap)
    except Exception:
        pass
    return max(32 * 1024 * 1024, min(cap * 3 // 4, 96 * 1024 * 1024))


def _pick_tb(B, L, D, vmem_budget_bytes, weight_bytes):
    """Batch rows per grid step, sized for the HBM-bandwidth-bound regime.

    Live VMEM per step ~= 2x double-buffered seq block (f32)
                        + ~3x block-sized f32 temporaries (proj/tanh, e*seq, bf16 operand)
                        + 2x the (small) resident projection weight,
    so aim for seq_block ~= (budget - weights) / 6.  Multi-MiB blocks amortize the
    ~0.35us/step grid overhead (tile sweeps only reach ~85% of HBM roofline at
    512+ wide tiles), unlike the old "TB*L ~= 256 MXU rows" heuristic.
    """
    row_bytes = L * D * 4
    usable = max(vmem_budget_bytes - 2 * weight_bytes, 6 * 8 * row_bytes)
    tb = max(8, int(usable // (6 * row_bytes)))
    tb -= tb % 8
    if tb >= B:
        if B < 16:
            return B  # single step; block extent == full batch (always legal)
        # Keep >=2 grid steps so the "parallel" axis can shard over v7x's 2 TCs.
        tb = _round_up(-(-B // 2), 8)
    # Prefer a tb that divides B: no ragged last block, no HBM padding pass.
    for cand in range(tb, 7, -8):
        if B % cand == 0:
            return cand
    return tb


def _attn_kernel(lens_ref, seq_ref, uwt_ref, ub_ref, wa_ref, out_ref):
    TB, L, D = seq_ref.shape
    Dp = uwt_ref.shape[1]

    seq_f32 = seq_ref[...].astype(jnp.float32)                   # (TB, L, D) ctx path

    # proj = seq @ U^T + b as one dense MXU matmul on the flat (TB*L, D) slab.
    # (L % 8 == 0 keeps the reshape a pure relayout; otherwise it costs a VMEM copy.)
    flat = seq_ref[...].reshape(TB * L, D).astype(uwt_ref.dtype)  # bf16 feed when enabled
    proj = jnp.dot(flat, uwt_ref[...], preferred_element_type=jnp.float32)
    proj = proj + ub_ref[...]                                     # (TB*L, Dp) f32
    t = jnp.tanh(proj).reshape(TB, L, Dp)

    # scores = <tanh(proj), Wa> : VPU multiply + lane reduce (no (D,1) matmul).
    scores = jnp.sum(t * wa_ref[...], axis=-1)                    # (TB, L)

    # Mask padded positions.  Large finite negative instead of -inf so a
    # zero-length row cannot produce NaN; for seq_len >= 1 the softmax result is
    # identical (exp underflows to exactly 0).
    lens = lens_ref[...]                                          # (TB, 1) int32
    pos = jax.lax.broadcasted_iota(jnp.int32, (TB, L), 1)
    scores = jnp.where(pos < lens, scores, jnp.float32(-1e30))

    # Numerically stable softmax over the sequence axis.
    m = jnp.max(scores, axis=1, keepdims=True)
    p = jnp.exp(scores - m)
    s = jnp.sum(p, axis=1, keepdims=True)
    inv = pl.reciprocal(s, approx=True)                           # EUP vrcp (free slot)
    inv = inv * (2.0 - s * inv)                                   # 1 Newton step -> ~f32 exact
    e = p * inv                                                   # (TB, L)

    # TODO(synk): training-mode dropout on `e` not implemented (eval semantics only).

    # ctx = sum_l e[:, l] * seq[:, l, :]  (VPU mul + sublane reduce).
    out_ref[...] = jnp.sum(e[:, :, None] * seq_f32, axis=1).astype(out_ref.dtype)


def simple_self_attention(seq, seq_lens, u_w, u_b, wa_w, *, tb=None, precision="bf16"):
    """seq: (B, L, D) f32; seq_lens: (B,) int; u_w: (D, D); u_b: (D,); wa_w: (1, D).

    precision="bf16" feeds the projection MXU matmul in bf16 (f32 accumulate,
    ~2-3x faster MACs); precision="f32" keeps full f32 parity with the reference.
    """
    B, L, D = seq.shape
    Dp = _round_up(D, 128)

    wdtype = jnp.bfloat16 if precision == "bf16" else jnp.float32
    weight_bytes = D * Dp * (2 if wdtype == jnp.bfloat16 else 4)

    vmem_limit = _vmem_limit_bytes()
    if tb is None:
        tb = _pick_tb(B, L, D, vmem_limit, weight_bytes)
    grid = (pl.cdiv(B, tb),)

    # Only the small parameter tensors get padded (output dim -> lane-dense Dp);
    # padded weight columns / bias / Wa entries are zero, so they contribute
    # exactly 0 to proj / scores.  The streamed seq tensor is left untouched.
    u_wt = jnp.pad(u_w.T.astype(jnp.float32), ((0, 0), (0, Dp - D))).astype(wdtype)  # (D, Dp)
    ub2 = jnp.pad(u_b.astype(jnp.float32), (0, Dp - D)).reshape(1, Dp)
    wa2 = jnp.pad(wa_w.astype(jnp.float32).reshape(-1), (0, Dp - D)).reshape(1, Dp)
    # NOTE: seq_lens stays a (tb, 1) int32 VMEM block; the lane-sparse DMA is
    # tb*4 B/step (noise) and keeps the per-row sublane broadcast trivially legal.
    lens2 = seq_lens.astype(jnp.int32).reshape(B, 1)

    grid_spec = pltpu.PrefetchScalarGridSpec(
        num_scalar_prefetch=0,
        grid=grid,
        in_specs=[
            pl.BlockSpec((tb, 1), lambda i: (i, 0)),              # seq_lens
            pl.BlockSpec((tb, L, D), lambda i: (i, 0, 0)),        # seq (full L, D extents)
            pl.BlockSpec((D, Dp), lambda i: (0, 0)),              # U^T (resident; bf16 halves VMEM)
            pl.BlockSpec((1, Dp), lambda i: (0, 0)),              # U bias
            pl.BlockSpec((1, Dp), lambda i: (0, 0)),              # Wa weight
        ],
        out_specs=pl.BlockSpec((tb, D), lambda i: (i, 0)),
    )

    cost = pl.CostEstimate(
        flops=int(2 * B * L * D * Dp + 6 * B * L * D),
        transcendentals=int(B * L * Dp + 2 * B * L),
        bytes_accessed=int(4 * B * L * D + 2 * weight_bytes + 8 * Dp + 4 * B * D + 4 * B),
    )

    out = pl.pallas_call(
        _attn_kernel,
        out_shape=jax.ShapeDtypeStruct((B, D), seq.dtype),
        grid_spec=grid_spec,
        compiler_params=pltpu.CompilerParams(
            dimension_semantics=("parallel",),
            vmem_limit_bytes=int(vmem_limit),
        ),
        cost_estimate=cost,
    )(lens2, seq, u_wt, ub2, wa2)
    return out


def _reference(seq, seq_lens, u_w, u_b, wa_w):
    proj = jnp.einsum("bld,ed->ble", seq, u_w) + u_b
    e = jnp.einsum("bld,od->blo", jnp.tanh(proj), wa_w)[..., 0]   # (B, L)
    L = seq.shape[1]
    mask = jnp.arange(L)[None, :] >= seq_lens[:, None]
    e = jnp.where(mask, -jnp.inf, e)
    e = jax.nn.softmax(e, axis=1)
    return jnp.einsum("bl,bld->bd", e, seq)


if __name__ == "__main__":
    B, L, D = 2, 8, 32
    key = jax.random.PRNGKey(0)
    k_seq, k_uw, k_ub, k_wa, k_seq2 = jax.random.split(key, 5)

    seq = jax.random.normal(k_seq, (B, L, D), dtype=jnp.float32)
    seq_lens = jnp.array([L, 5], dtype=jnp.int32)

    # Deterministic parameter init mirroring the PyTorch module's __init__:
    #  - nn.Linear(dim, dim) default: U(-1/sqrt(dim), 1/sqrt(dim)) for weight & bias
    #  - Wa: nn.init.uniform_(-0.2, 0.2), no bias
    bound = 1.0 / jnp.sqrt(jnp.float32(D))
    u_w = jax.random.uniform(k_uw, (D, D), jnp.float32, -bound, bound)
    u_b = jax.random.uniform(k_ub, (D,), jnp.float32, -bound, bound)
    wa_w = jax.random.uniform(k_wa, (1, D), jnp.float32, -0.2, 0.2)

    ref = _reference(seq, seq_lens, u_w, u_b, wa_w)

    # f32 precision path: tight parity with the f32 reference.
    out_f32 = jax.block_until_ready(
        simple_self_attention(seq, seq_lens, u_w, u_b, wa_w, precision="f32"))
    assert out_f32.shape == (B, D)
    assert jnp.allclose(out_f32, ref, atol=1e-5, rtol=1e-5), "f32 path mismatch vs reference"

    # Default bf16-MXU path (perf): relaxed tolerance (bf16 mantissa in the matmul).
    out_bf16 = jax.block_until_ready(
        simple_self_attention(seq, seq_lens, u_w, u_b, wa_w))
    assert jnp.allclose(out_bf16, ref, atol=5e-2, rtol=5e-2), "bf16 path mismatch vs reference"

    # Multi-step grid with a ragged last block (B=20, tb=8 -> grid=3); garbage
    # rows from the partial block are row-confined and their writes discarded.
    B2 = 20
    seq2 = jax.random.normal(k_seq2, (B2, L, D), dtype=jnp.float32)
    lens2 = jax.random.randint(jax.random.PRNGKey(1), (B2,), 1, L + 1).astype(jnp.int32)
    lens2 = lens2.at[0].set(L)   # PyTorch module implicitly assumes max(seq_lens) == L
    ref2 = _reference(seq2, lens2, u_w, u_b, wa_w)
    out2 = jax.block_until_ready(
        simple_self_attention(seq2, lens2, u_w, u_b, wa_w, tb=8, precision="f32"))
    assert jnp.allclose(out2, ref2, atol=1e-5, rtol=1e-5), "multi-block path mismatch"

    print("KERNEL_OK")
</pallas_src>

<mosaic_0001>
module attributes {stable_mosaic.version = 11 : i64} {
  func.func @_attn_kernel(%arg0: i32, %arg1: memref<2x1xi32, #tpu.memory_space<vmem>>, %arg2: memref<2x8x32xf32, #tpu.memory_space<vmem>>, %arg3: memref<32x128xf32, #tpu.memory_space<vmem>>, %arg4: memref<1x128xf32, #tpu.memory_space<vmem>>, %arg5: memref<1x128xf32, #tpu.memory_space<vmem>>, %arg6: memref<2x32xf32, #tpu.memory_space<vmem>>) attributes {dimension_semantics = [#tpu.dimension_semantics<parallel>], iteration_bounds = array<i64: 1>, scalar_prefetch = 0 : i64, scratch_operands = 0 : i64, tpu.core_type = #tpu.core_type<tc>, window_params = [{transform_indices = @transform_0, window_bounds = array<i64: 2, 1>}, {transform_indices = @transform_1, window_bounds = array<i64: 2, 8, 32>}, {pipeline_mode = #tpu.pipeline_mode<synchronous>, transform_indices = @transform_2, window_bounds = array<i64: 32, 128>}, {pipeline_mode = #tpu.pipeline_mode<synchronous>, transform_indices = @transform_3, window_bounds = array<i64: 1, 128>}, {pipeline_mode = #tpu.pipeline_mode<synchronous>, transform_indices = @transform_4, window_bounds = array<i64: 1, 128>}, {transform_indices = @transform_5, window_bounds = array<i64: 2, 32>}]} {
    %c0 = arith.constant 0 : index
    %c0_0 = arith.constant 0 : index
    %c0_1 = arith.constant 0 : index
    %0 = vector.load %arg2[%c0, %c0_0, %c0_1] : memref<2x8x32xf32, #tpu.memory_space<vmem>>, vector<2x8x32xf32>
    %c0_2 = arith.constant 0 : index
    %c0_3 = arith.constant 0 : index
    %c0_4 = arith.constant 0 : index
    %1 = vector.load %arg2[%c0_2, %c0_3, %c0_4] : memref<2x8x32xf32, #tpu.memory_space<vmem>>, vector<2x8x32xf32>
    %2 = vector.shape_cast %1 : vector<2x8x32xf32> to vector<16x32xf32>
    %c0_5 = arith.constant 0 : index
    %c0_6 = arith.constant 0 : index
    %3 = vector.load %arg3[%c0_5, %c0_6] : memref<32x128xf32, #tpu.memory_space<vmem>>, vector<32x128xf32>
    %cst = arith.constant dense<0.000000e+00> : vector<16x128xf32>
    %4 = tpu.matmul %2, %3, %cst {dimension_numbers = #tpu.dot_dimension_numbers<[1], [0], [0], [1], [0, 0, 1, 1], [], []>} : vector<16x32xf32>, vector<32x128xf32>, vector<16x128xf32> -> vector<16x128xf32>
    %c0_7 = arith.constant 0 : index
    %c0_8 = arith.constant 0 : index
    %5 = vector.load %arg4[%c0_7, %c0_8] : memref<1x128xf32, #tpu.memory_space<vmem>>, vector<1x128xf32>
    %6 = vector.broadcast %5 : vector<1x128xf32> to vector<16x128xf32>
    %7 = arith.addf %4, %6 : vector<16x128xf32>
    %8 = math.tanh %7 : vector<16x128xf32>
    %9 = vector.shape_cast %8 : vector<16x128xf32> to vector<2x8x128xf32>
    %c0_9 = arith.constant 0 : index
    %c0_10 = arith.constant 0 : index
    %10 = vector.load %arg5[%c0_9, %c0_10] : memref<1x128xf32, #tpu.memory_space<vmem>>, vector<1x128xf32>
    %11 = vector.shape_cast %10 : vector<1x128xf32> to vector<1x1x128xf32>
    %12 = vector.broadcast %11 : vector<1x1x128xf32> to vector<2x8x128xf32>
    %13 = arith.mulf %9, %12 : vector<2x8x128xf32>
    %cst_11 = arith.constant dense<0.000000e+00> : vector<2x8xf32>
    %14 = vector.multi_reduction <add>, %13, %cst_11 [2] : vector<2x8x128xf32> to vector<2x8xf32>
    %c0_12 = arith.constant 0 : index
    %c0_13 = arith.constant 0 : index
    %15 = vector.load %arg1[%c0_12, %c0_13] : memref<2x1xi32, #tpu.memory_space<vmem>>, vector<2x1xi32>
    %16 = tpu.iota {dimensions = array<i32: 1>} : vector<2x8xi32>
    %17 = vector.broadcast %15 : vector<2x1xi32> to vector<2x8xi32>
    %18 = arith.cmpi slt, %16, %17 : vector<2x8xi32>
    %cst_14 = arith.constant -1.000000e+30 : f32
    %19 = vector.broadcast %cst_14 : f32 to vector<2x8xf32>
    %20 = arith.select %18, %14, %19 : vector<2x8xi1>, vector<2x8xf32>
    %cst_15 = arith.constant dense<0xFF800000> : vector<2xf32>
    %21 = vector.multi_reduction <maximumf>, %20, %cst_15 [1] : vector<2x8xf32> to vector<2xf32>
    %22 = vector.shape_cast %21 : vector<2xf32> to vector<2x1xf32>
    %23 = vector.broadcast %22 : vector<2x1xf32> to vector<2x8xf32>
    %24 = arith.subf %20, %23 : vector<2x8xf32>
    %25 = math.exp %24 : vector<2x8xf32>
    %cst_16 = arith.constant dense<0.000000e+00> : vector<2xf32>
    %26 = vector.multi_reduction <add>, %25, %cst_16 [1] : vector<2x8xf32> to vector<2xf32>
    %27 = vector.shape_cast %26 : vector<2xf32> to vector<2x1xf32>
    %28 = tpu.reciprocal %27 {approx = true} : vector<2x1xf32> -> vector<2x1xf32>
    %29 = arith.mulf %27, %28 : vector<2x1xf32>
    %cst_17 = arith.constant 2.000000e+00 : f32
    %30 = vector.broadcast %cst_17 : f32 to vector<2x1xf32>
    %31 = arith.subf %30, %29 : vector<2x1xf32>
    %32 = arith.mulf %28, %31 : vector<2x1xf32>
    %33 = vector.broadcast %32 : vector<2x1xf32> to vector<2x8xf32>
    %34 = arith.mulf %25, %33 : vector<2x8xf32>
    %35 = vector.shape_cast %34 : vector<2x8xf32> to vector<2x8x1xf32>
    %36 = vector.broadcast %35 : vector<2x8x1xf32> to vector<2x8x32xf32>
    %37 = arith.mulf %36, %0 : vector<2x8x32xf32>
    %cst_18 = arith.constant dense<0.000000e+00> : vector<2x32xf32>
    %38 = vector.multi_reduction <add>, %37, %cst_18 [1] : vector<2x8x32xf32> to vector<2x32xf32>
    %c0_19 = arith.constant 0 : index
    %c0_20 = arith.constant 0 : index
    %39 = vector.load %arg6[%c0_19, %c0_20] : memref<2x32xf32, #tpu.memory_space<vmem>>, vector<2x32xf32>
    tpu.vector_store %arg6[%c0_19, %c0_20], %38 {strides = array<i32>} : memref<2x32xf32, #tpu.memory_space<vmem>>, vector<2x32xf32>,
    return
  }
  func.func @transform_0(%arg0: i32) -> (i32, i32) {
    %c0_i32 = arith.constant 0 : i32
    %c0_i32_0 = arith.constant 0 : i32
    return %arg0, %c0_i32 : i32, i32
  }
  func.func @transform_1(%arg0: i32) -> (i32, i32, i32) {
    %c0_i32 = arith.constant 0 : i32
    %c0_i32_0 = arith.constant 0 : i32
    %c0_i32_1 = arith.constant 0 : i32
    return %arg0, %c0_i32, %c0_i32_0 : i32, i32, i32
  }
  func.func @transform_2(%arg0: i32) -> (i32, i32) {
    %c0_i32 = arith.constant 0 : i32
    %c0_i32_0 = arith.constant 0 : i32
    %c0_i32_1 = arith.constant 0 : i32
    return %c0_i32, %c0_i32_0 : i32, i32
  }
  func.func @transform_3(%arg0: i32) -> (i32, i32) {
    %c0_i32 = arith.constant 0 : i32
    %c0_i32_0 = arith.constant 0 : i32
    %c0_i32_1 = arith.constant 0 : i32
    return %c0_i32, %c0_i32_0 : i32, i32
  }
  func.func @transform_4(%arg0: i32) -> (i32, i32) {
    %c0_i32 = arith.constant 0 : i32
    %c0_i32_0 = arith.constant 0 : i32
    %c0_i32_1 = arith.constant 0 : i32
    return %c0_i32, %c0_i32_0 : i32, i32
  }
  func.func @transform_5(%arg0: i32) -> (i32, i32) {
    %c0_i32 = arith.constant 0 : i32
    %c0_i32_0 = arith.constant 0 : i32
    return %arg0, %c0_i32 : i32, i32
  }
}

</mosaic_0001>

<llo_original>
// kernel: tpu_custom_call.1
$region0: #{tpu_custom_call.1}
  #allocation0 [shape = 'u32[]', space=smem, size = 0x4, offset = 0x4, fixed_abs, tag = 'smem constant byte address 0x4 - core index']
  #allocation1 [shape = 'u32[144,128]{1,0:T(1,128)}', space=vmem, size = 0x12000, scoped, tag = 'internal scratch']
  %s0 = inlined_call_operand.vmem [shape: s32[2,1], index: 0, kind: input, shape index: {}]
  %s1 = inlined_call_operand.hbm [shape: f32[2,8,32], index: 1, kind: input, shape index: {}]
  %s2 = inlined_call_operand.hbm [shape: f32[32,128], index: 2, kind: input, shape index: {}]
  %s3 = inlined_call_operand.vmem [shape: f32[1,128], index: 3, kind: input, shape index: {}]
  %s4 = inlined_call_operand.vmem [shape: f32[1,128], index: 4, kind: input, shape index: {}]
  %s5 = inlined_call_operand.hbm [shape: f32[2,32], index: 5, kind: output, shape index: {}]
  %s6 = sld [smem:[#allocation0]]
  $region38: #{tpu_custom_call.1} parent=0
    _
  %s8 = ssub.s32 1, %s6
  %s9 = scalar_select 0, %s8, %s6
  $region1: #{tpu_custom_call.1} parent=0
    #allocation2 [shape = 'u8[8192]{0}', space=vmem, size = 0x2000, scoped, tag = 'input window, operand 1, single buffered']
    #allocation3 [shape = 's32[1]{0}', space=sflag, size = 0x4, scoped, tag = 'scoped memory for tpu_custom_call.1']
    #allocation4 [shape = 's32[1]{0}', space=sflag, size = 0x4, scoped, tag = 'scoped memory for tpu_custom_call.1']
    #allocation5 [shape = 'u8[16384]{0}', space=vmem, size = 0x4000, scoped, tag = 'input window, operand 2, single buffered']
    #allocation6 [shape = 's32[1]{0}', space=sflag, size = 0x4, scoped, tag = 'scoped memory for tpu_custom_call.1']
    #allocation7 [shape = 'u8[1024]{0}', space=vmem, size = 0x400, scoped, tag = 'output window, operand 0, single buffered']
    %10 = vsyncpa [#allocation3], 0
    %11 = vsyncpa [#allocation6], 0
    %12 = vsyncpa [#allocation4], 0
    // Predicated region
    $region2: #{tpu_custom_call.1} parent=1 // pred_check
      _
    $region3: #{tpu_custom_call.1} parent=1 // pred_check_branch
      %14 = sbr.rel (0) target = $region5
    $region4: #{tpu_custom_call.1} parent=1 // pred_region
      _
    $region5: #{tpu_custom_call.1} parent=1 // pred_fallthru
      _
    // Predicated region
    $region6: #{tpu_custom_call.1} parent=1 // pred_check
      _
    $region7: #{tpu_custom_call.1} parent=1 // pred_check_branch
      %16 = sbr.rel (0) target = $region9
    $region8: #{tpu_custom_call.1} parent=1 // pred_region
      %s18 = ssub.s32 256, 256
      %19 = vsyncadd [#allocation3], %s18
      %s20 = sshll.u32 [#allocation2], 4
      %s21 = int_to_ptr.vmem [resolvable:$true] %s20
      %26 = dma.hbm_to_vmem [thread:$0]  %s1, 256, %s21, [#allocation3], 128, 128, 8
    $region9: #{tpu_custom_call.1} parent=1 // pred_fallthru
      _
    // Predicated region
    $region10: #{tpu_custom_call.1} parent=1 // pred_check
      _
    $region11: #{tpu_custom_call.1} parent=1 // pred_check_branch
      %28 = sbr.rel (0) target = $region13
    $region12: #{tpu_custom_call.1} parent=1 // pred_region
      %s30 = ssub.s32 512, 512
      %31 = vsyncadd [#allocation6], %s30
      %s32 = sshll.u32 [#allocation5], 4
      %s33 = int_to_ptr.vmem [resolvable:$true] %s32
      %38 = dma.hbm_to_vmem [thread:$0]  %s2, 512, %s33, [#allocation6], 128, 128, 8
    $region13: #{tpu_custom_call.1} parent=1 // pred_fallthru
      _
    // Predicated region
    $region14: #{tpu_custom_call.1} parent=1 // pred_check
      _
    $region15: #{tpu_custom_call.1} parent=1 // pred_check_branch
      %40 = sbr.rel (0) target = $region17
    $region16: #{tpu_custom_call.1} parent=1 // pred_region
      _
    $region17: #{tpu_custom_call.1} parent=1 // pred_fallthru
      _
    // Predicated region
    $region18: #{tpu_custom_call.1} parent=1 // pred_check
      _
    $region19: #{tpu_custom_call.1} parent=1 // pred_check_branch
      %42 = sbr.rel (0) target = $region21
    $region20: #{tpu_custom_call.1} parent=1 // pred_region
      _
    $region21: #{tpu_custom_call.1} parent=1 // pred_fallthru
      _
    // Predicated region
    $region22: #{tpu_custom_call.1} parent=1 // pred_check
      _
    $region23: #{tpu_custom_call.1} parent=1 // pred_check_branch
      %44 = sbr.rel (0) target = $region25
    $region24: #{tpu_custom_call.1} parent=1 // pred_region
      %45 = dma.done [#allocation3], 256
    $region25: #{tpu_custom_call.1} parent=1 // pred_fallthru
      _
    // Predicated region
    $region26: #{tpu_custom_call.1} parent=1 // pred_check
      _
    $region27: #{tpu_custom_call.1} parent=1 // pred_check_branch
      %47 = sbr.rel (0) target = $region29
    $region28: #{tpu_custom_call.1} parent=1 // pred_region
      %48 = dma.done [#allocation6], 512
    $region29: #{tpu_custom_call.1} parent=1 // pred_fallthru
      _
    %v49 = vld [vmem:[#allocation2] sm:$0xff]
    %v50 = vld [vmem:[#allocation2 + $0x8] sm:$0xff]
    %v51 = vld [vmem:[#allocation5] sm:$0xff]
    %v52 = vld [vmem:[#allocation5 + $0x8] sm:$0xff]
    %v53 = vld [vmem:[#allocation5 + $0x10] sm:$0xff]
    %v54 = vld [vmem:[#allocation5 + $0x18] sm:$0xff]
    %v55 = vld [vmem:[%s3] sm:$0x1]
    %v57 = vlaneseq
    %v58 = vshrl.u32 %v57, 7
    %v59 = vsub.s32 0, %v58
    %v60 = vrot.slane %v55, %v59
    %vm62 = vcmask 261120
    %v64 = vsel %vm62, %v49, 0
    %v67 = vsel %vm62, %v50, 0
    %69 = vmatprep.subr.mxu0 0.0
    %70 = vmatpush1.msra.mxu0 0.0
    %71 = vmatprep.subr.mxu0 0.0
    %72 = vmatpush1.msra.mxu0 0.0
    %73 = vmatprep.subr.mxu0 0.0
    %74 = vmatpush1.msra.mxu0 0.0
    %75 = vmatprep.subr.mxu0 0.0
    %76 = vmatpush1.msra.mxu0 0.0
    %77 = vmatprep.subr.mxu0 0.0
    %78 = vmatpush1.msra.mxu0 0.0
    %79 = vmatprep.subr.mxu0 0.0
    %80 = vmatpush1.msra.mxu0 0.0
    %81 = vmatprep.subr.mxu0 0.0
    %82 = vmatpush1.msra.mxu0 0.0
    %83 = vmatprep.subr.mxu0 0.0
    %84 = vmatpush1.msra.mxu0 0.0
    %85 = vmatprep.subr.mxu0 0.0
    %86 = vmatpush1.msra.mxu0 0.0
    %87 = vmatprep.subr.mxu0 0.0
    %88 = vmatpush1.msra.mxu0 0.0
    %89 = vmatprep.subr.mxu0 0.0
    %90 = vmatpush1.msra.mxu0 0.0
    %91 = vmatprep.subr.mxu0 0.0
    %92 = vmatpush1.msra.mxu0 0.0
    %93 = vmatprep.subr.mxu0 0.0
    %94 = vmatpush1.msra.mxu0 %v54
    %95 = vmatprep.subr.mxu0 0.0
    %96 = vmatpush1.msra.mxu0 %v53
    %97 = vmatprep.subr.mxu0 0.0
    %98 = vmatpush1.msra.mxu0 %v52
    %99 = vmatprep.subr.mxu0 0.0
    %100 = vmatpush1.msra.mxu0 %v51
    %101 = vmatprep.subr.mxu0 0.0
    %102 = vmatpush2.msra.mxu0 0.0
    %103 = vmatprep.subr.mxu0 0.0
    %104 = vmatpush2.msra.mxu0 0.0
    %105 = vmatprep.subr.mxu0 0.0
    %106 = vmatpush2.msra.mxu0 0.0
    %107 = vmatprep.subr.mxu0 0.0
    %108 = vmatpush2.msra.mxu0 0.0
    %109 = vmatprep.subr.mxu0 0.0
    %110 = vmatpush2.msra.mxu0 0.0
    %111 = vmatprep.subr.mxu0 0.0
    %112 = vmatpush2.msra.mxu0 0.0
    %113 = vmatprep.subr.mxu0 0.0
    %114 = vmatpush2.msra.mxu0 0.0
    %115 = vmatprep.subr.mxu0 0.0
    %116 = vmatpush2.msra.mxu0 0.0
    %117 = vmatprep.subr.mxu0 0.0
    %118 = vmatpush2.msra.mxu0 0.0
    %119 = vmatprep.subr.mxu0 0.0
    %120 = vmatpush2.msra.mxu0 0.0
    %121 = vmatprep.subr.mxu0 0.0
    %122 = vmatpush2.msra.mxu0 0.0
    %123 = vmatprep.subr.mxu0 0.0
    %124 = vmatpush2.msra.mxu0 0.0
    %125 = vmatprep.subr.mxu0 0.0
    %126 = vmatpush2.msra.mxu0 0.0
    %127 = vmatprep.subr.mxu0 0.0
    %128 = vmatpush2.msra.mxu0 0.0
    %129 = vmatprep.subr.mxu0 0.0
    %130 = vmatpush2.msra.mxu0 0.0
    %131 = vmatprep.subr.mxu0 0.0
    %132 = vmatpush2.msra.mxu0 0.0
    %133 = vmatprep.mubr.f32.mxu0 0.0
    %134 = vmatmul.mubr.f32.gmra.mxu0 %v64
    %v135 = vpop.f32.mrf.mxu0
    %v136 = vadd.f32 %v60, %v135
    %v137 = vpop.f32.mrf.mxu0
    %138 = vmatprep.mubr.f32.mxu0 0.0
    %139 = vmatmul.mubr.f32.gmra.mxu0 %v67
    %v140 = vpop.f32.mrf.mxu0
    %v141 = vadd.f32 %v60, %v140
    %v142 = vpop.f32.mrf.mxu0
    %143 = vdwg.mxu0
    %v144 = vtanh.pop %v136
    %v145 = vtanh.pop %v141
    %v146 = vld [vmem:[%s4] sm:$0x1]
    %v148 = vlaneseq
    %v149 = vshrl.u32 %v148, 7
    %v150 = vsub.s32 0, %v149
    %v151 = vrot.slane %v146, %v150
    %v153 = vmul.f32 %v144, %v151
    %v154 = vmul.f32 %v145, %v151
    %155 = vadd.xlane.f32.xlu0 %v153
    %v156 = vpop.xlane.xlu0 %155
    %157 = vadd.xlane.f32.xlu0 %v154
    %v158 = vpop.xlane.xlu0 %157
    %v159 = vld [vmem:[%s0] sm:$0x3]
    %v160 = vlaneseq
    %v161 = vand.u32 %v160, 127
    %162 = vset.pattern.permute.xlu0 0
    %163 = vperm.xlu0 %162, %v159
    %v164 = vpop.permute.xlu0 %163
    %vm165 = vcmp.lt.s32.totalorder %v161, %v164
    %v168 = vlaneseq
    %v169 = vshrl.u32 %v168, 7
    %v170 = vsub.s32 %v161, %v169
    %v171 = vrot.slane %v156, %v170
    %v172 = vlaneseq
    %v173 = vshrl.u32 %v172, 7
    %v174 = vsub.s32 %v161, %v173
    %v175 = vrot.slane %v158, %v174
    %vm176 = vcmask 1041409
    %v177 = vsel %vm176, %v175, %v171
    %v179 = vsel %vm165, %v177, -1e+30
    %vm180 = vcmask 58368
    %v181 = vsel %vm180, %v179, -inf
    %182 = vmax.xlane.f32.xlu0 %v181
    %v183 = vpop.xlane.xlu0 %182
    %v184 = vsub.f32 %v179, %v183
    %v185 = vmul.f32 %v184, 1.442695
    %v186 = vpow.pop %v185
    %v187 = vsel %vm180, %v186, 0.0
    %188 = vadd.xlane.f32.xlu0 %v187
    %v189 = vpop.xlane.xlu0 %188
    %v190 = vrcp.pop %v189
    %v191 = vmul.f32 %v189, %v190
    %v192 = vsub.f32 2.0, %v191
    %v193 = vmul.f32 %v190, %v192
    %v194 = vmul.f32 %v186, %v193
    %v195 = vlaneseq
    %v196 = vshrl.u32 %v195, 7
    %v197 = vsub.s32 0, %v196
    %v198 = vrot.slane %v194, %v197
    %200 = vbcast.lane.b32.xlu0 %v198, 256
    %v201 = vpop.permute.xlu0 %200
    %v202 = vlaneseq
    %v203 = vshrl.u32 %v202, 7
    %v204 = vsub.s32 1, %v203
    %v205 = vrot.slane %v194, %v204
    %207 = vbcast.lane.b32.xlu0 %v205, 256
    %v208 = vpop.permute.xlu0 %207
    %v209 = vmul.f32 %v201, %v49
    %v210 = vmul.f32 %v208, %v50
    %v211 = vsel %vm62, %v209, 0.0
    %v212 = vrot.slane %v211, 4
    %v213 = vadd.f32 %v211, %v212
    %v214 = vrot.slane %v213, 2
    %v215 = vadd.f32 %v213, %v214
    %v216 = vrot.slane %v215, 1
    %v217 = vadd.f32 %v215, %v216
    %v218 = vsel %vm62, %v210, 0.0
    %v219 = vrot.slane %v218, 4
    %v220 = vadd.f32 %v218, %v219
    %v221 = vrot.slane %v220, 2
    %v222 = vadd.f32 %v220, %v221
    %v223 = vrot.slane %v222, 1
    %v224 = vadd.f32 %v222, %v223
    %v227 = vsel %vm176, %v224, %v217
    %vm229 = vcmask 254976
    %230 = vst.msk [vmem:[#allocation7] sm:$0x3] %vm229, %v227
    // Predicated region
    $region30: #{tpu_custom_call.1} parent=1 // pred_check
      _
    $region31: #{tpu_custom_call.1} parent=1 // pred_check_branch
      %232 = sbr.rel (0) target = $region33
    $region32: #{tpu_custom_call.1} parent=1 // pred_region
      %s234 = ssub.s32 32, 32
      %235 = vsyncadd [#allocation4], %s234
      %s237 = sshll.u32 [#allocation7], 4
      %s238 = int_to_ptr.vmem [resolvable:$true] %s237
      %240 = dma.vmem_to_hbm [thread:$0]  %s238, 32, %s5, [#allocation4]
    $region33: #{tpu_custom_call.1} parent=1 // pred_fallthru
      _
    // Predicated region
    $region34: #{tpu_custom_call.1} parent=1 // pred_check
      _
    $region35: #{tpu_custom_call.1} parent=1 // pred_check_branch
      %242 = sbr.rel (0) target = $region37
    $region36: #{tpu_custom_call.1} parent=1 // pred_region
      %243 = dma.done [#allocation4], 32
    $region37: #{tpu_custom_call.1} parent=1 // pred_fallthru
      _
    %244 = vsyncpa [#allocation3], 1
    %245 = vsyncpa [#allocation6], 1
    %246 = vsyncpa [#allocation4], 1

</llo_original>
